<compile_context>
chip_gen: v6e
topology: v6e:2x2x1
jax: 0.10.0
libtpu: 0.0.40
codegen_flags: <defaults>
</compile_context>

<pallas_src>
import functools

import jax
import jax.numpy as jnp
from jax.experimental import pallas as pl
from jax.experimental.pallas import tpu as pltpu

EPS = 1e-5
LANE = 128


def _round_up(v, m):
    return (v + m - 1) // m * m


# ---------------------------------------------------------------------------
# Kernels
# ---------------------------------------------------------------------------
def _stats1_kernel(x_ref, w1_ref, b1_ref, s1_ref, sum_ref, sumsq_ref,
                   *, block_m, m_actual):
    """Accumulate per-channel sum / sumsq of h = x@W1 + b1; emit (mean1, rstd1)."""
    i = pl.program_id(0)

    @pl.when(i == 0)
    def _():
        sum_ref[...] = jnp.zeros_like(sum_ref)
        sumsq_ref[...] = jnp.zeros_like(sumsq_ref)

    h = jnp.dot(x_ref[...], w1_ref[...], preferred_element_type=jnp.float32)
    h = h + b1_ref[...]

    if m_actual % block_m != 0:
        row = i * block_m + jax.lax.broadcasted_iota(jnp.int32, (block_m, 1), 0)
        valid = (row < m_actual).astype(jnp.float32)
        hv = h * valid
    else:
        hv = h
    sum_ref[...] += jnp.sum(hv, axis=0, keepdims=True)
    sumsq_ref[...] += jnp.sum(hv * h, axis=0, keepdims=True)

    @pl.when(i == pl.num_programs(0) - 1)
    def _():
        inv_m = jnp.float32(1.0 / m_actual)
        mean = sum_ref[...] * inv_m
        var = jnp.maximum(sumsq_ref[...] * inv_m - mean * mean, 0.0)
        s1_ref[0:1, :] = mean
        s1_ref[1:2, :] = jax.lax.rsqrt(var + EPS)


def _stats2_kernel(x_ref, w1_ref, b1_ref, g1_ref, be1_ref, s1_ref,
                   w2_ref, b2_ref, s2_ref, sum_ref, sumsq_ref,
                   *, block_m, m_actual):
    """Accumulate per-channel sum / sumsq of y = relu(bn1(h))@W2 + b2; emit (mean2, rstd2)."""
    i = pl.program_id(0)

    @pl.when(i == 0)
    def _():
        sum_ref[...] = jnp.zeros_like(sum_ref)
        sumsq_ref[...] = jnp.zeros_like(sumsq_ref)

    h = jnp.dot(x_ref[...], w1_ref[...], preferred_element_type=jnp.float32)
    h = (h + b1_ref[...] - s1_ref[0:1, :]) * s1_ref[1:2, :]
    h = jnp.maximum(h * g1_ref[...] + be1_ref[...], 0.0)
    y = jnp.dot(h, w2_ref[...], preferred_element_type=jnp.float32) + b2_ref[...]

    if m_actual % block_m != 0:
        row = i * block_m + jax.lax.broadcasted_iota(jnp.int32, (block_m, 1), 0)
        valid = (row < m_actual).astype(jnp.float32)
        yv = y * valid
    else:
        yv = y
    sum_ref[...] += jnp.sum(yv, axis=0, keepdims=True)
    sumsq_ref[...] += jnp.sum(yv * y, axis=0, keepdims=True)

    @pl.when(i == pl.num_programs(0) - 1)
    def _():
        inv_m = jnp.float32(1.0 / m_actual)
        mean = sum_ref[...] * inv_m
        var = jnp.maximum(sumsq_ref[...] * inv_m - mean * mean, 0.0)
        s2_ref[0:1, :] = mean
        s2_ref[1:2, :] = jax.lax.rsqrt(var + EPS)


def _out_kernel(x_ref, w1_ref, b1_ref, g1_ref, be1_ref, s1_ref,
                w2_ref, b2_ref, s2_ref, o_ref):
    """Recompute the pipeline with the global stats and write the normalized output."""
    h = jnp.dot(x_ref[...], w1_ref[...], preferred_element_type=jnp.float32)
    h = (h + b1_ref[...] - s1_ref[0:1, :]) * s1_ref[1:2, :]
    h = jnp.maximum(h * g1_ref[...] + be1_ref[...], 0.0)
    y = jnp.dot(h, w2_ref[...], preferred_element_type=jnp.float32) + b2_ref[...]
    o_ref[...] = (y - s2_ref[0:1, :]) * s2_ref[1:2, :]


# ---------------------------------------------------------------------------
# Wrapper
# ---------------------------------------------------------------------------
def local_embedding_forward(x, params, *, block_m=1024):
    """x: (B, N, input_dim) float32. Returns (B, N, output_dim)."""
    w1, b1, g1, be1, w2, b2 = params
    B, N, C = x.shape
    H = w1.shape[1]
    O = w2.shape[1]
    M = B * N

    # Lane-pad channel dims (zero pad -> padded channels are identically zero, BN of the real
    # channels is unchanged, all stores are full 128-lane vst; sliced off at the end).
    Hp = _round_up(H, LANE)
    Op = _round_up(O, LANE)
    w1p = jnp.zeros((C, Hp), jnp.float32).at[:, :H].set(w1)
    b1p = jnp.zeros((1, Hp), jnp.float32).at[:, :H].set(b1)
    g1p = jnp.ones((1, Hp), jnp.float32).at[:, :H].set(g1)
    be1p = jnp.zeros((1, Hp), jnp.float32).at[:, :H].set(be1)
    w2p = jnp.zeros((Hp, Op), jnp.float32).at[:H, :O].set(w2)
    b2p = jnp.zeros((1, Op), jnp.float32).at[:, :O].set(b2)

    # M tiling: multiple-of-8 sublane tile, sized well under v7x's 64 MiB VMEM.
    bm = _round_up(min(block_m, M), 8)
    Mp = _round_up(M, bm)
    grid = (Mp // bm,)

    x2d = x.reshape(M, C).astype(jnp.float32)
    if Mp != M:
        x2d = jnp.zeros((Mp, C), jnp.float32).at[:M, :].set(x2d)

    x_spec = pl.BlockSpec((bm, C), lambda i: (i, 0))

    def full(a):  # small resident operand (weights / stats), constant block index
        return pl.BlockSpec(a.shape, lambda i: (0,) * a.ndim)

    cp_acc = pltpu.CompilerParams(dimension_semantics=("arbitrary",),
                                  vmem_limit_bytes=32 * 1024 * 1024)
    cp_par = pltpu.CompilerParams(dimension_semantics=("parallel",),
                                  vmem_limit_bytes=32 * 1024 * 1024)

    # Pass 1: BN1 statistics of h.
    stats1 = pl.pallas_call(
        functools.partial(_stats1_kernel, block_m=bm, m_actual=M),
        out_shape=jax.ShapeDtypeStruct((2, Hp), jnp.float32),
        grid=grid,
        in_specs=[x_spec, full(w1p), full(b1p)],
        out_specs=pl.BlockSpec((2, Hp), lambda i: (0, 0)),
        scratch_shapes=[pltpu.VMEM((1, Hp), jnp.float32),
                        pltpu.VMEM((1, Hp), jnp.float32)],
        compiler_params=cp_acc,
    )(x2d, w1p, b1p)

    # Pass 2: BN2 statistics of y.
    stats2 = pl.pallas_call(
        functools.partial(_stats2_kernel, block_m=bm, m_actual=M),
        out_shape=jax.ShapeDtypeStruct((2, Op), jnp.float32),
        grid=grid,
        in_specs=[x_spec, full(w1p), full(b1p), full(g1p), full(be1p),
                  full(stats1), full(w2p), full(b2p)],
        out_specs=pl.BlockSpec((2, Op), lambda i: (0, 0)),
        scratch_shapes=[pltpu.VMEM((1, Op), jnp.float32),
                        pltpu.VMEM((1, Op), jnp.float32)],
        compiler_params=cp_acc,
    )(x2d, w1p, b1p, g1p, be1p, stats1, w2p, b2p)

    # Pass 3: normalized output (independent per tile -> parallel / megacore friendly).
    out_p = pl.pallas_call(
        _out_kernel,
        out_shape=jax.ShapeDtypeStruct((Mp, Op), jnp.float32),
        grid=grid,
        in_specs=[x_spec, full(w1p), full(b1p), full(g1p), full(be1p),
                  full(stats1), full(w2p), full(b2p), full(stats2)],
        out_specs=pl.BlockSpec((bm, Op), lambda i: (i, 0)),
        compiler_params=cp_par,
    )(x2d, w1p, b1p, g1p, be1p, stats1, w2p, b2p, stats2)

    return out_p[:M, :O].reshape(B, N, O)


# ---------------------------------------------------------------------------
# Params / reference / test
# ---------------------------------------------------------------------------
def init_params(key, input_dim, hidden_dim, output_dim):
    k1, k2, k3, k4 = jax.random.split(key, 4)
    # PyTorch Conv1d weight is (out, in, 1); with k=1 we store it transposed as (in, out).
    w1 = 0.1 * jax.random.normal(k1, (input_dim, hidden_dim), jnp.float32)
    b1 = 0.1 * jax.random.normal(k2, (1, hidden_dim), jnp.float32)
    g1 = jnp.ones((1, hidden_dim), jnp.float32)    # BatchNorm1d default affine init
    be1 = jnp.zeros((1, hidden_dim), jnp.float32)
    w2 = 0.1 * jax.random.normal(k3, (hidden_dim, output_dim), jnp.float32)
    b2 = 0.1 * jax.random.normal(k4, (1, output_dim), jnp.float32)
    return (w1, b1, g1, be1, w2, b2)


def _reference(x, params):
    """Pure-JAX reference (training-mode BN forward)."""
    w1, b1, g1, be1, w2, b2 = params
    B, N, _ = x.shape
    h = x.reshape(B * N, -1) @ w1 + b1
    h = (h - h.mean(0, keepdims=True)) / jnp.sqrt(h.var(0, keepdims=True) + EPS)
    h = jnp.maximum(h * g1 + be1, 0.0)
    y = h @ w2 + b2
    y = (y - y.mean(0, keepdims=True)) / jnp.sqrt(y.var(0, keepdims=True) + EPS)
    return y.reshape(B, N, -1)


if __name__ == "__main__":
    B, N = 2, 16
    input_dim, hidden_dim, output_dim = 4, 32, 16

    key = jax.random.PRNGKey(0)
    kx, kp = jax.random.split(key)
    x = jax.random.normal(kx, (B, N, input_dim), jnp.float32)
    params = init_params(kp, input_dim, hidden_dim, output_dim)

    out = local_embedding_forward(x, params)
    out = jax.block_until_ready(out)

    ref = _reference(x, params)
    assert out.shape == (B, N, output_dim)
    assert jnp.allclose(out, ref, atol=1e-4, rtol=1e-4), float(jnp.max(jnp.abs(out - ref)))

    print("KERNEL_OK")
</pallas_src>

<mosaic_0001>
module attributes {stable_mosaic.version = 11 : i64} {
  func.func @_stats1_kernel(%arg0: i32, %arg1: memref<32x4xf32, #tpu.memory_space<vmem>>, %arg2: memref<4x128xf32, #tpu.memory_space<vmem>>, %arg3: memref<1x128xf32, #tpu.memory_space<vmem>>, %arg4: memref<2x128xf32, #tpu.memory_space<vmem>>, %arg5: memref<1x128xf32, #tpu.memory_space<vmem>>, %arg6: memref<1x128xf32, #tpu.memory_space<vmem>>) attributes {dimension_semantics = [#tpu.dimension_semantics<arbitrary>], iteration_bounds = array<i64: 1>, scalar_prefetch = 0 : i64, scratch_operands = 2 : i64, tpu.core_type = #tpu.core_type<tc>, window_params = [{transform_indices = @transform_0, window_bounds = array<i64: 32, 4>}, {pipeline_mode = #tpu.pipeline_mode<synchronous>, transform_indices = @transform_1, window_bounds = array<i64: 4, 128>}, {pipeline_mode = #tpu.pipeline_mode<synchronous>, transform_indices = @transform_2, window_bounds = array<i64: 1, 128>}, {pipeline_mode = #tpu.pipeline_mode<synchronous>, transform_indices = @transform_3, window_bounds = array<i64: 2, 128>}]} {
    %c0_i32 = arith.constant 0 : i32
    %0 = arith.cmpi eq, %arg0, %c0_i32 : i32
    %1 = arith.extui %0 : i1 to i32
    %c0_i32_0 = arith.constant 0 : i32
    %2 = arith.cmpi ne, %1, %c0_i32_0 : i32
    scf.if %2 {
      %cst_18 = arith.constant 0.000000e+00 : f32
      %23 = vector.broadcast %cst_18 : f32 to vector<1x128xf32>
      %c0_19 = arith.constant 0 : index
      %c0_20 = arith.constant 0 : index
      %24 = vector.load %arg5[%c0_19, %c0_20] : memref<1x128xf32, #tpu.memory_space<vmem>>, vector<1x128xf32>
      tpu.vector_store %arg5[%c0_19, %c0_20], %23 {strides = array<i32>} : memref<1x128xf32, #tpu.memory_space<vmem>>, vector<1x128xf32>,
      %cst_21 = arith.constant 0.000000e+00 : f32
      %25 = vector.broadcast %cst_21 : f32 to vector<1x128xf32>
      %c0_22 = arith.constant 0 : index
      %c0_23 = arith.constant 0 : index
      %26 = vector.load %arg6[%c0_22, %c0_23] : memref<1x128xf32, #tpu.memory_space<vmem>>, vector<1x128xf32>
      tpu.vector_store %arg6[%c0_22, %c0_23], %25 {strides = array<i32>} : memref<1x128xf32, #tpu.memory_space<vmem>>, vector<1x128xf32>,
    } else {
    }
    %c0 = arith.constant 0 : index
    %c0_1 = arith.constant 0 : index
    %3 = vector.load %arg1[%c0, %c0_1] : memref<32x4xf32, #tpu.memory_space<vmem>>, vector<32x4xf32>
    %c0_2 = arith.constant 0 : index
    %c0_3 = arith.constant 0 : index
    %4 = vector.load %arg2[%c0_2, %c0_3] : memref<4x128xf32, #tpu.memory_space<vmem>>, vector<4x128xf32>
    %cst = arith.constant dense<0.000000e+00> : vector<32x128xf32>
    %5 = tpu.matmul %3, %4, %cst {dimension_numbers = #tpu.dot_dimension_numbers<[1], [0], [0], [1], [0, 0, 1, 1], [], []>} : vector<32x4xf32>, vector<4x128xf32>, vector<32x128xf32> -> vector<32x128xf32>
    %c0_4 = arith.constant 0 : index
    %c0_5 = arith.constant 0 : index
    %6 = vector.load %arg3[%c0_4, %c0_5] : memref<1x128xf32, #tpu.memory_space<vmem>>, vector<1x128xf32>
    %7 = vector.broadcast %6 : vector<1x128xf32> to vector<32x128xf32>
    %8 = arith.addf %5, %7 : vector<32x128xf32>
    %c0_6 = arith.constant 0 : index
    %c0_7 = arith.constant 0 : index
    %9 = vector.load %arg5[%c0_6, %c0_7] : memref<1x128xf32, #tpu.memory_space<vmem>>, vector<1x128xf32>
    %cst_8 = arith.constant dense<0.000000e+00> : vector<128xf32>
    %10 = vector.multi_reduction <add>, %8, %cst_8 [0] : vector<32x128xf32> to vector<128xf32>
    %11 = vector.shape_cast %10 : vector<128xf32> to vector<1x128xf32>
    %12 = arith.addf %9, %11 : vector<1x128xf32>
    %c0_9 = arith.constant 0 : index
    %c0_10 = arith.constant 0 : index
    %13 = vector.load %arg5[%c0_9, %c0_10] : memref<1x128xf32, #tpu.memory_space<vmem>>, vector<1x128xf32>
    tpu.vector_store %arg5[%c0_9, %c0_10], %12 {strides = array<i32>} : memref<1x128xf32, #tpu.memory_space<vmem>>, vector<1x128xf32>,
    %c0_11 = arith.constant 0 : index
    %c0_12 = arith.constant 0 : index
    %14 = vector.load %arg6[%c0_11, %c0_12] : memref<1x128xf32, #tpu.memory_space<vmem>>, vector<1x128xf32>
    %15 = arith.mulf %8, %8 : vector<32x128xf32>
    %cst_13 = arith.constant dense<0.000000e+00> : vector<128xf32>
    %16 = vector.multi_reduction <add>, %15, %cst_13 [0] : vector<32x128xf32> to vector<128xf32>
    %17 = vector.shape_cast %16 : vector<128xf32> to vector<1x128xf32>
    %18 = arith.addf %14, %17 : vector<1x128xf32>
    %c0_14 = arith.constant 0 : index
    %c0_15 = arith.constant 0 : index
    %19 = vector.load %arg6[%c0_14, %c0_15] : memref<1x128xf32, #tpu.memory_space<vmem>>, vector<1x128xf32>
    tpu.vector_store %arg6[%c0_14, %c0_15], %18 {strides = array<i32>} : memref<1x128xf32, #tpu.memory_space<vmem>>, vector<1x128xf32>,
    %c0_i32_16 = arith.constant 0 : i32
    %20 = arith.cmpi eq, %arg0, %c0_i32_16 : i32
    %21 = arith.extui %20 : i1 to i32
    %c0_i32_17 = arith.constant 0 : i32
    %22 = arith.cmpi ne, %21, %c0_i32_17 : i32
    scf.if %22 {
      %c0_18 = arith.constant 0 : index
      %c0_19 = arith.constant 0 : index
      %23 = vector.load %arg5[%c0_18, %c0_19] : memref<1x128xf32, #tpu.memory_space<vmem>>, vector<1x128xf32>
      %cst_20 = arith.constant 3.125000e-02 : f32
      %24 = vector.broadcast %cst_20 : f32 to vector<1x128xf32>
      %25 = arith.mulf %23, %24 : vector<1x128xf32>
      %c0_21 = arith.constant 0 : index
      %c0_22 = arith.constant 0 : index
      %26 = vector.load %arg6[%c0_21, %c0_22] : memref<1x128xf32, #tpu.memory_space<vmem>>, vector<1x128xf32>
      %cst_23 = arith.constant 3.125000e-02 : f32
      %27 = vector.broadcast %cst_23 : f32 to vector<1x128xf32>
      %28 = arith.mulf %26, %27 : vector<1x128xf32>
      %29 = arith.mulf %25, %25 : vector<1x128xf32>
      %30 = arith.subf %28, %29 : vector<1x128xf32>
      %cst_24 = arith.constant 0.000000e+00 : f32
      %31 = vector.broadcast %cst_24 : f32 to vector<1x128xf32>
      %32 = arith.maximumf %30, %31 : vector<1x128xf32>
      %c0_25 = arith.constant 0 : index
      %c0_26 = arith.constant 0 : index
      %33 = vector.load %arg4[%c0_25, %c0_26] : memref<2x128xf32, #tpu.memory_space<vmem>>, vector<1x128xf32>
      tpu.vector_store %arg4[%c0_25, %c0_26], %25 {strides = array<i32>} : memref<2x128xf32, #tpu.memory_space<vmem>>, vector<1x128xf32>,
      %cst_27 = arith.constant 9.99999974E-6 : f32
      %34 = vector.broadcast %cst_27 : f32 to vector<1x128xf32>
      %35 = arith.addf %32, %34 : vector<1x128xf32>
      %36 = math.rsqrt %35 : vector<1x128xf32>
      %c1 = arith.constant 1 : index
      %c0_28 = arith.constant 0 : index
      %37 = vector.load %arg4[%c1, %c0_28] : memref<2x128xf32, #tpu.memory_space<vmem>>, vector<1x128xf32>
      tpu.vector_store %arg4[%c1, %c0_28], %36 {strides = array<i32>} : memref<2x128xf32, #tpu.memory_space<vmem>>, vector<1x128xf32>,
    } else {
    }
    return
  }
  func.func @transform_0(%arg0: i32) -> (i32, i32) {
    %c0_i32 = arith.constant 0 : i32
    %c0_i32_0 = arith.constant 0 : i32
    return %arg0, %c0_i32 : i32, i32
  }
  func.func @transform_1(%arg0: i32) -> (i32, i32) {
    %c0_i32 = arith.constant 0 : i32
    %c0_i32_0 = arith.constant 0 : i32
    %c0_i32_1 = arith.constant 0 : i32
    return %c0_i32, %c0_i32_0 : i32, i32
  }
  func.func @transform_2(%arg0: i32) -> (i32, i32) {
    %c0_i32 = arith.constant 0 : i32
    %c0_i32_0 = arith.constant 0 : i32
    %c0_i32_1 = arith.constant 0 : i32
    return %c0_i32, %c0_i32_0 : i32, i32
  }
  func.func @transform_3(%arg0: i32) -> (i32, i32) {
    %c0_i32 = arith.constant 0 : i32
    %c0_i32_0 = arith.constant 0 : i32
    %c0_i32_1 = arith.constant 0 : i32
    return %c0_i32, %c0_i32_0 : i32, i32
  }
}

</mosaic_0001>

<llo_original>
// kernel: tpu_custom_call.1
$region0: #{tpu_custom_call.1}
  #allocation0 [shape = 'u32[]', space=smem, size = 0x4, offset = 0x4, fixed_abs, tag = 'smem constant byte address 0x4 - core index']
  #allocation1 [shape = 'u32[144,128]{1,0:T(1,128)}', space=vmem, size = 0x12000, scoped, tag = 'internal scratch']
  #allocation2 [shape = 'f32[1,128]{1,0:T(1,128)}', space=vmem, size = 0x200, scoped, tag = 'scratch operand']
  #allocation3 [shape = 'f32[1,128]{1,0:T(1,128)}', space=vmem, size = 0x200, scoped, tag = 'scratch operand']
  %s0 = inlined_call_operand.vmem [shape: f32[32,4], index: 0, kind: input, shape index: {}]
  %s1 = inlined_call_operand.vmem [shape: f32[4,128], index: 1, kind: input, shape index: {}]
  %s2 = inlined_call_operand.vmem [shape: f32[1,128], index: 2, kind: input, shape index: {}]
  %s3 = inlined_call_operand.hbm [shape: f32[2,128], index: 3, kind: output, shape index: {}]
  %s4 = sld [smem:[#allocation0]]
  $region30: #{tpu_custom_call.1} parent=0
    _
  %s6 = ssub.s32 1, %s4
  %s7 = scalar_select 0, %s6, %s4
  $region1: #{tpu_custom_call.1} parent=0
    #allocation4 [shape = 'u8[1024]{0}', space=vmem, size = 0x400, scoped, tag = 'output window, operand 0, single buffered']
    #allocation5 [shape = 's32[1]{0}', space=sflag, size = 0x4, scoped, tag = 'scoped memory for tpu_custom_call.1']
    %8 = vsyncpa [#allocation5], 0
    // Predicated region
    $region2: #{tpu_custom_call.1} parent=1 // pred_check
      _
    $region3: #{tpu_custom_call.1} parent=1 // pred_check_branch
      %10 = sbr.rel (0) target = $region5
    $region4: #{tpu_custom_call.1} parent=1 // pred_region
      _
    $region5: #{tpu_custom_call.1} parent=1 // pred_fallthru
      _
    // Predicated region
    $region6: #{tpu_custom_call.1} parent=1 // pred_check
      _
    $region7: #{tpu_custom_call.1} parent=1 // pred_check_branch
      %12 = sbr.rel (0) target = $region9
    $region8: #{tpu_custom_call.1} parent=1 // pred_region
      _
    $region9: #{tpu_custom_call.1} parent=1 // pred_fallthru
      _
    // Predicated region
    $region10: #{tpu_custom_call.1} parent=1 // pred_check
      _
    $region11: #{tpu_custom_call.1} parent=1 // pred_check_branch
      %14 = sbr.rel (0) target = $region13
    $region12: #{tpu_custom_call.1} parent=1 // pred_region
      _
    $region13: #{tpu_custom_call.1} parent=1 // pred_fallthru
      _
    %p15 = scmp.eq.s32.totalorder 0, 0
    // Predicated region
    $region14: #{tpu_custom_call.1} parent=1 // pred_check
      %p16 = pneg %p15
    $region15: #{tpu_custom_call.1} parent=1 // pred_check_branch
      %18 = sbr.rel (%p16) target = $region17
    $region16: #{tpu_custom_call.1} parent=1 // pred_region
      %19 = vst [vmem:[#allocation2] sm:$0x1] 0.0
      %20 = vst [vmem:[#allocation3] sm:$0x1] 0.0
    $region17: #{tpu_custom_call.1} parent=1 // pred_fallthru
      _
    %v21 = vld [vmem:[%s0] sm:$0xff]
    %v22 = vld [vmem:[%s0 + $0x8] sm:$0xff]
    %v23 = vld [vmem:[%s0 + $0x10] sm:$0xff]
    %v24 = vld [vmem:[%s0 + $0x18] sm:$0xff]
    %v25 = vld [vmem:[%s1] sm:$0xf]
    %v26 = vld [vmem:[%s2] sm:$0x1]
    %v28 = vlaneseq
    %v29 = vshrl.u32 %v28, 7
    %v30 = vsub.s32 0, %v29
    %v31 = vrot.slane %v26, %v30
    %vm33 = vcmask 31744
    %v35 = vsel %vm33, %v21, 0
    %v38 = vsel %vm33, %v22, 0
    %v41 = vsel %vm33, %v23, 0
    %v44 = vsel %vm33, %v24, 0
    %vm46 = vcmask 1043456
    %v48 = vsel %vm46, %v25, 0
    %50 = vmatprep.subr.mxu0 0.0
    %51 = vmatpush1.msra.mxu0 0.0
    %52 = vmatprep.subr.mxu0 0.0
    %53 = vmatpush1.msra.mxu0 0.0
    %54 = vmatprep.subr.mxu0 0.0
    %55 = vmatpush1.msra.mxu0 0.0
    %56 = vmatprep.subr.mxu0 0.0
    %57 = vmatpush1.msra.mxu0 0.0
    %58 = vmatprep.subr.mxu0 0.0
    %59 = vmatpush1.msra.mxu0 0.0
    %60 = vmatprep.subr.mxu0 0.0
    %61 = vmatpush1.msra.mxu0 0.0
    %62 = vmatprep.subr.mxu0 0.0
    %63 = vmatpush1.msra.mxu0 0.0
    %64 = vmatprep.subr.mxu0 0.0
    %65 = vmatpush1.msra.mxu0 0.0
    %66 = vmatprep.subr.mxu0 0.0
    %67 = vmatpush1.msra.mxu0 0.0
    %68 = vmatprep.subr.mxu0 0.0
    %69 = vmatpush1.msra.mxu0 0.0
    %70 = vmatprep.subr.mxu0 0.0
    %71 = vmatpush1.msra.mxu0 0.0
    %72 = vmatprep.subr.mxu0 0.0
    %73 = vmatpush1.msra.mxu0 0.0
    %74 = vmatprep.subr.mxu0 0.0
    %75 = vmatpush1.msra.mxu0 0.0
    %76 = vmatprep.subr.mxu0 0.0
    %77 = vmatpush1.msra.mxu0 0.0
    %78 = vmatprep.subr.mxu0 0.0
    %79 = vmatpush1.msra.mxu0 0.0
    %80 = vmatprep.subr.mxu0 0.0
    %81 = vmatpush1.msra.mxu0 %v48
    %82 = vmatprep.subr.mxu0 0.0
    %83 = vmatpush2.msra.mxu0 0.0
    %84 = vmatprep.subr.mxu0 0.0
    %85 = vmatpush2.msra.mxu0 0.0
    %86 = vmatprep.subr.mxu0 0.0
    %87 = vmatpush2.msra.mxu0 0.0
    %88 = vmatprep.subr.mxu0 0.0
    %89 = vmatpush2.msra.mxu0 0.0
    %90 = vmatprep.subr.mxu0 0.0
    %91 = vmatpush2.msra.mxu0 0.0
    %92 = vmatprep.subr.mxu0 0.0
    %93 = vmatpush2.msra.mxu0 0.0
    %94 = vmatprep.subr.mxu0 0.0
    %95 = vmatpush2.msra.mxu0 0.0
    %96 = vmatprep.subr.mxu0 0.0
    %97 = vmatpush2.msra.mxu0 0.0
    %98 = vmatprep.subr.mxu0 0.0
    %99 = vmatpush2.msra.mxu0 0.0
    %100 = vmatprep.subr.mxu0 0.0
    %101 = vmatpush2.msra.mxu0 0.0
    %102 = vmatprep.subr.mxu0 0.0
    %103 = vmatpush2.msra.mxu0 0.0
    %104 = vmatprep.subr.mxu0 0.0
    %105 = vmatpush2.msra.mxu0 0.0
    %106 = vmatprep.subr.mxu0 0.0
    %107 = vmatpush2.msra.mxu0 0.0
    %108 = vmatprep.subr.mxu0 0.0
    %109 = vmatpush2.msra.mxu0 0.0
    %110 = vmatprep.subr.mxu0 0.0
    %111 = vmatpush2.msra.mxu0 0.0
    %112 = vmatprep.subr.mxu0 0.0
    %113 = vmatpush2.msra.mxu0 0.0
    %114 = vmatprep.mubr.f32.mxu0 0.0
    %115 = vmatmul.mubr.f32.gmra.mxu0 %v35
    %v116 = vpop.f32.mrf.mxu0
    %v117 = vadd.f32 %v31, %v116
    %v118 = vpop.f32.mrf.mxu0
    %119 = vmatprep.mubr.f32.mxu0 0.0
    %120 = vmatmul.mubr.f32.gmra.mxu0 %v38
    %v121 = vpop.f32.mrf.mxu0
    %v122 = vadd.f32 %v31, %v121
    %v123 = vpop.f32.mrf.mxu0
    %124 = vmatprep.mubr.f32.mxu0 0.0
    %125 = vmatmul.mubr.f32.gmra.mxu0 %v41
    %v126 = vpop.f32.mrf.mxu0
    %v127 = vadd.f32 %v31, %v126
    %v128 = vpop.f32.mrf.mxu0
    %129 = vmatprep.mubr.f32.mxu0 0.0
    %130 = vmatmul.mubr.f32.gmra.mxu0 %v44
    %v131 = vpop.f32.mrf.mxu0
    %v132 = vadd.f32 %v31, %v131
    %v133 = vpop.f32.mrf.mxu0
    %134 = vdwg.mxu0
    %v135 = vld [vmem:[#allocation2] sm:$0x1]
    %v136 = vadd.f32 %v117, %v122
    %v137 = vadd.f32 %v136, %v127
    %v138 = vadd.f32 %v137, %v132
    %v139 = vrot.slane %v138, 4
    %v140 = vadd.f32 %v138, %v139
    %v141 = vrot.slane %v140, 2
    %v142 = vadd.f32 %v140, %v141
    %v143 = vrot.slane %v142, 1
    %v144 = vadd.f32 %v142, %v143
    %v145 = vadd.f32 %v135, %v144
    %146 = vst [vmem:[#allocation2] sm:$0x1] %v145
    %v147 = vld [vmem:[#allocation3] sm:$0x1]
    %v148 = vmul.f32 %v117, %v117
    %v149 = vmul.f32 %v122, %v122
    %v150 = vmul.f32 %v127, %v127
    %v151 = vmul.f32 %v132, %v132
    %v152 = vadd.f32 %v148, %v149
    %v153 = vadd.f32 %v152, %v150
    %v154 = vadd.f32 %v153, %v151
    %v155 = vrot.slane %v154, 4
    %v156 = vadd.f32 %v154, %v155
    %v157 = vrot.slane %v156, 2
    %v158 = vadd.f32 %v156, %v157
    %v159 = vrot.slane %v158, 1
    %v160 = vadd.f32 %v158, %v159
    %v161 = vadd.f32 %v147, %v160
    %162 = vst [vmem:[#allocation3] sm:$0x1] %v161
    // Predicated region
    $region18: #{tpu_custom_call.1} parent=1 // pred_check
      %p163 = pneg %p15
    $region19: #{tpu_custom_call.1} parent=1 // pred_check_branch
      %165 = sbr.rel (%p163) target = $region21
    $region20: #{tpu_custom_call.1} parent=1 // pred_region
      %v166 = vld [vmem:[#allocation2] sm:$0x1]
      %v167 = vmul.f32 %v166, 0.03125
      %v168 = vld [vmem:[#allocation3] sm:$0x1]
      %v169 = vmul.f32 %v168, 0.03125
      %v170 = vmul.f32 %v167, %v167
      %v171 = vsub.f32 %v169, %v170
      %v172 = vmax.f32 %v171, 0.0
      %173 = vst [vmem:[#allocation4] sm:$0x1] %v167
      %v174 = vadd.f32 %v172, 1e-05
      %v175 = vrsqrt.pop %v174
      %176 = vst [vmem:[#allocation4 + $0x1] sm:$0x1] %v175
    $region21: #{tpu_custom_call.1} parent=1 // pred_fallthru
      _
    // Predicated region
    $region22: #{tpu_custom_call.1} parent=1 // pred_check
      _
    $region23: #{tpu_custom_call.1} parent=1 // pred_check_branch
      %178 = sbr.rel (0) target = $region25
    $region24: #{tpu_custom_call.1} parent=1 // pred_region
      %s180 = ssub.s32 32, 32
      %181 = vsyncadd [#allocation5], %s180
      %s183 = sshll.u32 [#allocation4], 4
      %s184 = int_to_ptr.vmem [resolvable:$true] %s183
      %186 = dma.vmem_to_hbm [thread:$0]  %s184, 32, %s3, [#allocation5]
    $region25: #{tpu_custom_call.1} parent=1 // pred_fallthru
      _
    // Predicated region
    $region26: #{tpu_custom_call.1} parent=1 // pred_check
      _
    $region27: #{tpu_custom_call.1} parent=1 // pred_check_branch
      %188 = sbr.rel (0) target = $region29
    $region28: #{tpu_custom_call.1} parent=1 // pred_region
      %189 = dma.done [#allocation5], 32
    $region29: #{tpu_custom_call.1} parent=1 // pred_fallthru
      _
    %190 = vsyncpa [#allocation5], 1

</llo_original>
